<compile_context>
chip_gen: v7x
topology: tpu7x:2x2x1
jax: 0.10.0
libtpu: 0.0.40
codegen_flags: <defaults>
</compile_context>

<pallas_src>
import functools

import jax
import jax.numpy as jnp
from jax import lax
from jax.experimental import pallas as pl
from jax.experimental.pallas import tpu as pltpu


def _cdiv(a, b):
    return -(-a // b)


def _round_up(a, b):
    return _cdiv(a, b) * b


def _transh_tile_kernel(head_ref, rnorm_ref, rhyper_ref, tail_ref,
                        head_c_ref, rnorm_c_ref, rhyper_c_ref, tail_c_ref,
                        out_ref, acc_ref, *, margin, C, epsilon, batch,
                        masked):
    """Processes one (tile_b, D) slab of triples; accumulates partial sums."""
    f32 = jnp.float32
    s = pl.program_id(0)              # shard ("parallel") index
    i = pl.program_id(1)              # tile ("arbitrary" / reduction) index
    num_tiles = pl.num_programs(1)
    tile_b = head_ref.shape[0]

    @pl.when(i == 0)
    def _init():
        acc_ref[0] = f32(0.0)         # sum of hinge terms
        acc_ref[1] = f32(0.0)         # sum of scale terms
        acc_ref[2] = f32(0.0)         # sum of orthogonal terms

    head = head_ref[...].astype(f32)
    rnorm = rnorm_ref[...].astype(f32)
    rhyper = rhyper_ref[...].astype(f32)
    tail = tail_ref[...].astype(f32)
    head_c = head_c_ref[...].astype(f32)
    rnorm_c = rnorm_c_ref[...].astype(f32)
    rhyper_c = rhyper_c_ref[...].astype(f32)
    tail_c = tail_c_ref[...].astype(f32)

    if masked:
        row0 = (s * num_tiles + i) * tile_b
        ridx = row0 + lax.broadcasted_iota(jnp.int32, (tile_b, 1), 0)
        valid = ridx < batch          # (tile_b, 1) bool — masks padded rows

        def keep(x):
            return jnp.where(valid, x, 0.0)
    else:
        def keep(x):
            return x

    def normalize(w):
        # F.normalize(w, p=2, dim=-1) == w / max(||w||_2, 1e-12)
        ssq = jnp.sum(w * w, axis=1, keepdims=True)
        return w * lax.rsqrt(jnp.maximum(ssq, 1e-24))

    def score(h_e, t_e, w, r_h):
        # project(h,w) - project(t,w) == project(h - t, w)   (linearity)
        wn = normalize(w)
        ht = h_e - t_e
        d = ht - jnp.sum(ht * wn, axis=1, keepdims=True) * wn + r_h
        # self.norm == 2 -> L2 norm over the feature dim
        return jnp.sqrt(jnp.sum(d * d, axis=1, keepdims=True))   # (tile_b, 1)

    pos = score(head, tail, rnorm, rhyper)
    neg = score(head_c, tail_c, rnorm_c, rhyper_c)

    # MarginRankingLoss(margin, 'mean') with target y = -1:
    #   mean(relu(pos - neg + margin)); the 1/B is applied at finalize.
    acc_ref[0] += jnp.sum(keep(jnp.maximum(pos - neg + margin, 0.0)))

    # scale_loss over entity rows of [h, t, h_c, t_c]  (4B rows total)
    def scale(e):
        return jnp.sum(keep(jnp.maximum(
            jnp.sum(e * e, axis=1, keepdims=True) - 1.0, 0.0)))

    acc_ref[1] += scale(head) + scale(tail) + scale(head_c) + scale(tail_c)

    # orthogonal_loss over relation rows of [r, r_c]  (2B rows total)
    def orth(rel, w):
        dot = jnp.sum(rel * w, axis=1, keepdims=True)
        nrm = jnp.sum(rel * rel, axis=1, keepdims=True)   # (||rel||_2)^2
        ratio = dot * dot * pl.reciprocal(nrm, approx=False)
        return jnp.sum(keep(jnp.maximum(ratio - epsilon * epsilon, 0.0)))

    acc_ref[2] += orth(rhyper, rnorm) + orth(rhyper_c, rnorm_c)

    @pl.when(i == num_tiles - 1)
    def _finalize():
        partial = (acc_ref[0] / batch
                   + C * (acc_ref[1] / (4.0 * batch)
                          + acc_ref[2] / (2.0 * batch)))
        # Lane-dense, unmasked store of the per-shard partial loss.
        out_ref[...] = jnp.zeros(out_ref.shape, f32) + partial


def transh_forward(entity_emb, rel_norm_emb, rel_hyper_emb,
                   current_triples, corrupted_triples,
                   *, margin, C, epsilon, tile_b=None, num_shards=None):
    """current_triples / corrupted_triples: (B, 3) int32 [h, r, t]."""
    B = int(current_triples.shape[0])
    D = int(entity_emb.shape[1])

    if num_shards is None:
        # Shard the batch across 2 TensorCores (v7x) once it is big enough;
        # an extent-2 "parallel" axis is harmless on single-core chips.
        num_shards = 2 if B >= 4096 else 1

    if tile_b is None:
        # Keep the double-buffered f32 working set (8 inputs x 2 buffers)
        # comfortably under the 32 MiB scoped-VMEM limit on every chip.
        vmem_budget = 20 * 1024 * 1024
        cap = max(8, vmem_budget // (8 * 2 * D * 4))
        tile_b = max(8, min(1024, (cap // 8) * 8))

    rows_per_shard = _cdiv(B, num_shards)
    tile_b = min(tile_b, _round_up(rows_per_shard, 8))
    tile_b = max(8, (tile_b // 8) * 8)
    num_tiles = _cdiv(rows_per_shard, tile_b)
    B_pad = num_shards * num_tiles * tile_b

    h, r, t = (current_triples[:, 0], current_triples[:, 1],
               current_triples[:, 2])
    h_c, r_c, t_c = (corrupted_triples[:, 0], corrupted_triples[:, 1],
                     corrupted_triples[:, 2])

    if B_pad != B:
        # Pad the *indices* (with row 0) so padded rows gather real data
        # (no 0/0 in the orthogonal loss); their contributions are masked
        # out inside the kernel.
        pad = jnp.zeros((B_pad - B,), h.dtype)
        h, r, t, h_c, r_c, t_c = (jnp.concatenate([x, pad])
                                  for x in (h, r, t, h_c, r_c, t_c))

    # Glue: embedding gathers in plain JAX.
    # TODO(synk): for D >= 128, move the gather in-kernel (scalar-prefetched
    # indices + per-row DMA) to avoid materializing these (B, D) temporaries.
    head = jnp.take(entity_emb, h, axis=0)
    tail = jnp.take(entity_emb, t, axis=0)
    head_c = jnp.take(entity_emb, h_c, axis=0)
    tail_c = jnp.take(entity_emb, t_c, axis=0)
    rnorm = jnp.take(rel_norm_emb, r, axis=0)
    rnorm_c = jnp.take(rel_norm_emb, r_c, axis=0)
    rhyper = jnp.take(rel_hyper_emb, r, axis=0)
    rhyper_c = jnp.take(rel_hyper_emb, r_c, axis=0)

    kernel = functools.partial(
        _transh_tile_kernel, margin=float(margin), C=float(C),
        epsilon=float(epsilon), batch=float(B), masked=(B_pad != B))

    in_spec = pl.BlockSpec((tile_b, D), lambda s, i: (s * num_tiles + i, 0))
    grid_spec = pltpu.PrefetchScalarGridSpec(
        num_scalar_prefetch=0,
        grid=(num_shards, num_tiles),
        in_specs=[in_spec] * 8,
        out_specs=pl.BlockSpec((8, 128), lambda s, i: (s, 0)),
        scratch_shapes=[pltpu.SMEM((3,), jnp.float32)],
    )
    out = pl.pallas_call(
        kernel,
        out_shape=jax.ShapeDtypeStruct((num_shards * 8, 128), jnp.float32),
        grid_spec=grid_spec,
        compiler_params=pltpu.CompilerParams(
            dimension_semantics=("parallel", "arbitrary"),
            vmem_limit_bytes=32 * 1024 * 1024),
    )(head, rnorm, rhyper, tail, head_c, rnorm_c, rhyper_c, tail_c)

    # One scalar per shard; summing them gives the total loss (each partial
    # already carries its 1/B, 1/(4B), 1/(2B) weights).
    return jnp.sum(out.reshape(num_shards, 8, 128)[:, 0, 0])


def _reference_forward(entity_emb, rel_norm_emb, rel_hyper_emb,
                       cur, cor, *, margin, C, epsilon):
    def project(ent, w):
        wn = w / jnp.maximum(jnp.linalg.norm(w, axis=-1, keepdims=True), 1e-12)
        return ent - jnp.sum(ent * wn, axis=1, keepdims=True) * wn

    def score(tr):
        h_e = entity_emb[tr[:, 0]]
        r_n = rel_norm_emb[tr[:, 1]]
        r_h = rel_hyper_emb[tr[:, 1]]
        t_e = entity_emb[tr[:, 2]]
        d = project(h_e, r_n) + r_h - project(t_e, r_n)
        return jnp.linalg.norm(d, axis=1)

    pos, neg = score(cur), score(cor)
    loss = jnp.mean(jnp.maximum(pos - neg + margin, 0.0))
    ents = jnp.concatenate([entity_emb[cur[:, 0]], entity_emb[cur[:, 2]],
                            entity_emb[cor[:, 0]], entity_emb[cor[:, 2]]])
    rels = jnp.concatenate([rel_hyper_emb[cur[:, 1]],
                            rel_hyper_emb[cor[:, 1]]])
    ws = jnp.concatenate([rel_norm_emb[cur[:, 1]], rel_norm_emb[cor[:, 1]]])
    scale_loss = jnp.sum(jnp.maximum(jnp.sum(ents ** 2, axis=1) - 1.0, 0.0))
    dot = jnp.sum(rels * ws, axis=1) ** 2
    nrm = jnp.sum(rels ** 2, axis=1)
    orth = jnp.sum(jnp.maximum(dot / nrm - epsilon ** 2, 0.0))
    return loss + C * (scale_loss / ents.shape[0] + orth / rels.shape[0])


if __name__ == "__main__":
    entity_num, relation_num, dimension = 40, 12, 32
    margin, C, epsilon = 1.0, 0.25, 0.1   # norm = 2 (L2) baked into the kernel
    B = 8

    key = jax.random.PRNGKey(0)
    (k_ent, k_rn, k_rh, k_h, k_r, k_t,
     k_hc, k_rc, k_tc) = jax.random.split(key, 9)

    def xavier_uniform(k, shape):
        fan_out, fan_in = shape
        bound = (6.0 / (fan_in + fan_out)) ** 0.5
        return jax.random.uniform(k, shape, jnp.float32, -bound, bound)

    entity_emb = xavier_uniform(k_ent, (entity_num, dimension))
    rel_norm_emb = xavier_uniform(k_rn, (relation_num, dimension))
    rel_hyper_emb = xavier_uniform(k_rh, (relation_num, dimension))

    h = jax.random.randint(k_h, (B,), 0, entity_num, jnp.int32)
    r = jax.random.randint(k_r, (B,), 0, relation_num, jnp.int32)
    t = jax.random.randint(k_t, (B,), 0, entity_num, jnp.int32)
    h_c = jax.random.randint(k_hc, (B,), 0, entity_num, jnp.int32)
    r_c = jax.random.randint(k_rc, (B,), 0, relation_num, jnp.int32)
    t_c = jax.random.randint(k_tc, (B,), 0, entity_num, jnp.int32)
    current_triples = jnp.stack([h, r, t], axis=1)
    corrupted_triples = jnp.stack([h_c, r_c, t_c], axis=1)

    # Default single-shard, unpadded path.
    loss = transh_forward(entity_emb, rel_norm_emb, rel_hyper_emb,
                          current_triples, corrupted_triples,
                          margin=margin, C=C, epsilon=epsilon)
    loss = jax.block_until_ready(loss)
    ref = _reference_forward(entity_emb, rel_norm_emb, rel_hyper_emb,
                             current_triples, corrupted_triples,
                             margin=margin, C=C, epsilon=epsilon)
    assert jnp.allclose(loss, ref, rtol=1e-4, atol=1e-5), (loss, ref)

    # Exercise the multi-shard ("parallel" axis) + padded/masked path at a
    # ragged batch size.
    B2 = 7
    cur2, cor2 = current_triples[:B2], corrupted_triples[:B2]
    loss2 = transh_forward(entity_emb, rel_norm_emb, rel_hyper_emb,
                           cur2, cor2, margin=margin, C=C, epsilon=epsilon,
                           num_shards=2, tile_b=8)
    loss2 = jax.block_until_ready(loss2)
    ref2 = _reference_forward(entity_emb, rel_norm_emb, rel_hyper_emb,
                              cur2, cor2, margin=margin, C=C, epsilon=epsilon)
    assert jnp.allclose(loss2, ref2, rtol=1e-4, atol=1e-5), (loss2, ref2)

    print("KERNEL_OK")
</pallas_src>

<mosaic_0001>
module attributes {stable_mosaic.version = 11 : i64} {
  func.func @_transh_tile_kernel(%arg0: i32, %arg1: i32, %arg2: memref<8x32xf32, #tpu.memory_space<vmem>>, %arg3: memref<8x32xf32, #tpu.memory_space<vmem>>, %arg4: memref<8x32xf32, #tpu.memory_space<vmem>>, %arg5: memref<8x32xf32, #tpu.memory_space<vmem>>, %arg6: memref<8x32xf32, #tpu.memory_space<vmem>>, %arg7: memref<8x32xf32, #tpu.memory_space<vmem>>, %arg8: memref<8x32xf32, #tpu.memory_space<vmem>>, %arg9: memref<8x32xf32, #tpu.memory_space<vmem>>, %arg10: memref<8x128xf32, #tpu.memory_space<vmem>>, %arg11: memref<3xf32, #tpu.memory_space<smem>>) attributes {dimension_semantics = [#tpu.dimension_semantics<parallel>, #tpu.dimension_semantics<arbitrary>], iteration_bounds = array<i64: 1, 1>, scalar_prefetch = 0 : i64, scratch_operands = 1 : i64, tpu.core_type = #tpu.core_type<tc>, window_params = [{transform_indices = @transform_0, window_bounds = array<i64: 8, 32>}, {transform_indices = @transform_1, window_bounds = array<i64: 8, 32>}, {transform_indices = @transform_2, window_bounds = array<i64: 8, 32>}, {transform_indices = @transform_3, window_bounds = array<i64: 8, 32>}, {transform_indices = @transform_4, window_bounds = array<i64: 8, 32>}, {transform_indices = @transform_5, window_bounds = array<i64: 8, 32>}, {transform_indices = @transform_6, window_bounds = array<i64: 8, 32>}, {transform_indices = @transform_7, window_bounds = array<i64: 8, 32>}, {transform_indices = @transform_8, window_bounds = array<i64: 8, 128>}]} {
    %c0_i32 = arith.constant 0 : i32
    %0 = arith.cmpi eq, %arg1, %c0_i32 : i32
    %1 = arith.extui %0 : i1 to i32
    %c0_i32_0 = arith.constant 0 : i32
    %2 = arith.cmpi ne, %1, %c0_i32_0 : i32
    scf.if %2 {
      %cst_58 = arith.constant 0.000000e+00 : f32
      %c0_59 = arith.constant 0 : index
      %154 = memref.load %arg11[%c0_59] : memref<3xf32, #tpu.memory_space<smem>>
      memref.store %cst_58, %arg11[%c0_59] : memref<3xf32, #tpu.memory_space<smem>>
      %cst_60 = arith.constant 0.000000e+00 : f32
      %c1_61 = arith.constant 1 : index
      %155 = memref.load %arg11[%c1_61] : memref<3xf32, #tpu.memory_space<smem>>
      memref.store %cst_60, %arg11[%c1_61] : memref<3xf32, #tpu.memory_space<smem>>
      %cst_62 = arith.constant 0.000000e+00 : f32
      %c2_63 = arith.constant 2 : index
      %156 = memref.load %arg11[%c2_63] : memref<3xf32, #tpu.memory_space<smem>>
      memref.store %cst_62, %arg11[%c2_63] : memref<3xf32, #tpu.memory_space<smem>>
    } else {
    }
    %c0 = arith.constant 0 : index
    %c0_1 = arith.constant 0 : index
    %3 = vector.load %arg2[%c0, %c0_1] : memref<8x32xf32, #tpu.memory_space<vmem>>, vector<8x32xf32>
    %c0_2 = arith.constant 0 : index
    %c0_3 = arith.constant 0 : index
    %4 = vector.load %arg3[%c0_2, %c0_3] : memref<8x32xf32, #tpu.memory_space<vmem>>, vector<8x32xf32>
    %c0_4 = arith.constant 0 : index
    %c0_5 = arith.constant 0 : index
    %5 = vector.load %arg4[%c0_4, %c0_5] : memref<8x32xf32, #tpu.memory_space<vmem>>, vector<8x32xf32>
    %c0_6 = arith.constant 0 : index
    %c0_7 = arith.constant 0 : index
    %6 = vector.load %arg5[%c0_6, %c0_7] : memref<8x32xf32, #tpu.memory_space<vmem>>, vector<8x32xf32>
    %c0_8 = arith.constant 0 : index
    %c0_9 = arith.constant 0 : index
    %7 = vector.load %arg6[%c0_8, %c0_9] : memref<8x32xf32, #tpu.memory_space<vmem>>, vector<8x32xf32>
    %c0_10 = arith.constant 0 : index
    %c0_11 = arith.constant 0 : index
    %8 = vector.load %arg7[%c0_10, %c0_11] : memref<8x32xf32, #tpu.memory_space<vmem>>, vector<8x32xf32>
    %c0_12 = arith.constant 0 : index
    %c0_13 = arith.constant 0 : index
    %9 = vector.load %arg8[%c0_12, %c0_13] : memref<8x32xf32, #tpu.memory_space<vmem>>, vector<8x32xf32>
    %c0_14 = arith.constant 0 : index
    %c0_15 = arith.constant 0 : index
    %10 = vector.load %arg9[%c0_14, %c0_15] : memref<8x32xf32, #tpu.memory_space<vmem>>, vector<8x32xf32>
    %11 = arith.mulf %4, %4 : vector<8x32xf32>
    %cst = arith.constant dense<0.000000e+00> : vector<8xf32>
    %12 = vector.multi_reduction <add>, %11, %cst [1] : vector<8x32xf32> to vector<8xf32>
    %13 = vector.shape_cast %12 : vector<8xf32> to vector<8x1xf32>
    %cst_16 = arith.constant 1.000000e-24 : f32
    %14 = vector.broadcast %cst_16 : f32 to vector<8x1xf32>
    %15 = arith.maximumf %13, %14 : vector<8x1xf32>
    %16 = math.rsqrt %15 : vector<8x1xf32>
    %17 = vector.broadcast %16 : vector<8x1xf32> to vector<8x32xf32>
    %18 = arith.mulf %4, %17 : vector<8x32xf32>
    %19 = arith.subf %3, %6 : vector<8x32xf32>
    %20 = arith.mulf %19, %18 : vector<8x32xf32>
    %cst_17 = arith.constant dense<0.000000e+00> : vector<8xf32>
    %21 = vector.multi_reduction <add>, %20, %cst_17 [1] : vector<8x32xf32> to vector<8xf32>
    %22 = vector.shape_cast %21 : vector<8xf32> to vector<8x1xf32>
    %23 = vector.broadcast %22 : vector<8x1xf32> to vector<8x32xf32>
    %24 = arith.mulf %23, %18 : vector<8x32xf32>
    %25 = arith.subf %19, %24 : vector<8x32xf32>
    %26 = arith.addf %25, %5 : vector<8x32xf32>
    %27 = arith.mulf %26, %26 : vector<8x32xf32>
    %cst_18 = arith.constant dense<0.000000e+00> : vector<8xf32>
    %28 = vector.multi_reduction <add>, %27, %cst_18 [1] : vector<8x32xf32> to vector<8xf32>
    %29 = vector.shape_cast %28 : vector<8xf32> to vector<8x1xf32>
    %30 = math.sqrt %29 : vector<8x1xf32>
    %31 = arith.mulf %8, %8 : vector<8x32xf32>
    %cst_19 = arith.constant dense<0.000000e+00> : vector<8xf32>
    %32 = vector.multi_reduction <add>, %31, %cst_19 [1] : vector<8x32xf32> to vector<8xf32>
    %33 = vector.shape_cast %32 : vector<8xf32> to vector<8x1xf32>
    %cst_20 = arith.constant 1.000000e-24 : f32
    %34 = vector.broadcast %cst_20 : f32 to vector<8x1xf32>
    %35 = arith.maximumf %33, %34 : vector<8x1xf32>
    %36 = math.rsqrt %35 : vector<8x1xf32>
    %37 = vector.broadcast %36 : vector<8x1xf32> to vector<8x32xf32>
    %38 = arith.mulf %8, %37 : vector<8x32xf32>
    %39 = arith.subf %7, %10 : vector<8x32xf32>
    %40 = arith.mulf %39, %38 : vector<8x32xf32>
    %cst_21 = arith.constant dense<0.000000e+00> : vector<8xf32>
    %41 = vector.multi_reduction <add>, %40, %cst_21 [1] : vector<8x32xf32> to vector<8xf32>
    %42 = vector.shape_cast %41 : vector<8xf32> to vector<8x1xf32>
    %43 = vector.broadcast %42 : vector<8x1xf32> to vector<8x32xf32>
    %44 = arith.mulf %43, %38 : vector<8x32xf32>
    %45 = arith.subf %39, %44 : vector<8x32xf32>
    %46 = arith.addf %45, %9 : vector<8x32xf32>
    %47 = arith.mulf %46, %46 : vector<8x32xf32>
    %cst_22 = arith.constant dense<0.000000e+00> : vector<8xf32>
    %48 = vector.multi_reduction <add>, %47, %cst_22 [1] : vector<8x32xf32> to vector<8xf32>
    %49 = vector.shape_cast %48 : vector<8xf32> to vector<8x1xf32>
    %50 = math.sqrt %49 : vector<8x1xf32>
    %c0_23 = arith.constant 0 : index
    %51 = memref.load %arg11[%c0_23] : memref<3xf32, #tpu.memory_space<smem>>
    %52 = arith.subf %30, %50 : vector<8x1xf32>
    %cst_24 = arith.constant 1.000000e+00 : f32
    %53 = vector.broadcast %cst_24 : f32 to vector<8x1xf32>
    %54 = arith.addf %52, %53 : vector<8x1xf32>
    %cst_25 = arith.constant 0.000000e+00 : f32
    %55 = vector.broadcast %cst_25 : f32 to vector<8x1xf32>
    %56 = arith.maximumf %54, %55 : vector<8x1xf32>
    %57 = vector.shape_cast %56 : vector<8x1xf32> to vector<1x8x1xf32>
    %cst_26 = arith.constant dense<0.000000e+00> : vector<1xf32>
    %58 = vector.multi_reduction <add>, %57, %cst_26 [1, 2] : vector<1x8x1xf32> to vector<1xf32>
    %59 = vector.shape_cast %58 : vector<1xf32> to vector<1x1x1xf32>
    %60 = vector.extract %59[0, 0, 0] : f32 from vector<1x1x1xf32>
    %61 = arith.addf %51, %60 : f32
    %c0_27 = arith.constant 0 : index
    %62 = memref.load %arg11[%c0_27] : memref<3xf32, #tpu.memory_space<smem>>
    memref.store %61, %arg11[%c0_27] : memref<3xf32, #tpu.memory_space<smem>>
    %c1 = arith.constant 1 : index
    %63 = memref.load %arg11[%c1] : memref<3xf32, #tpu.memory_space<smem>>
    %64 = arith.mulf %3, %3 : vector<8x32xf32>
    %cst_28 = arith.constant dense<0.000000e+00> : vector<8xf32>
    %65 = vector.multi_reduction <add>, %64, %cst_28 [1] : vector<8x32xf32> to vector<8xf32>
    %66 = vector.shape_cast %65 : vector<8xf32> to vector<8x1xf32>
    %cst_29 = arith.constant 1.000000e+00 : f32
    %67 = vector.broadcast %cst_29 : f32 to vector<8x1xf32>
    %68 = arith.subf %66, %67 : vector<8x1xf32>
    %cst_30 = arith.constant 0.000000e+00 : f32
    %69 = vector.broadcast %cst_30 : f32 to vector<8x1xf32>
    %70 = arith.maximumf %68, %69 : vector<8x1xf32>
    %71 = vector.shape_cast %70 : vector<8x1xf32> to vector<1x8x1xf32>
    %cst_31 = arith.constant dense<0.000000e+00> : vector<1xf32>
    %72 = vector.multi_reduction <add>, %71, %cst_31 [1, 2] : vector<1x8x1xf32> to vector<1xf32>
    %73 = vector.shape_cast %72 : vector<1xf32> to vector<1x1x1xf32>
    %74 = vector.extract %73[0, 0, 0] : f32 from vector<1x1x1xf32>
    %75 = arith.mulf %6, %6 : vector<8x32xf32>
    %cst_32 = arith.constant dense<0.000000e+00> : vector<8xf32>
    %76 = vector.multi_reduction <add>, %75, %cst_32 [1] : vector<8x32xf32> to vector<8xf32>
    %77 = vector.shape_cast %76 : vector<8xf32> to vector<8x1xf32>
    %cst_33 = arith.constant 1.000000e+00 : f32
    %78 = vector.broadcast %cst_33 : f32 to vector<8x1xf32>
    %79 = arith.subf %77, %78 : vector<8x1xf32>
    %cst_34 = arith.constant 0.000000e+00 : f32
    %80 = vector.broadcast %cst_34 : f32 to vector<8x1xf32>
    %81 = arith.maximumf %79, %80 : vector<8x1xf32>
    %82 = vector.shape_cast %81 : vector<8x1xf32> to vector<1x8x1xf32>
    %cst_35 = arith.constant dense<0.000000e+00> : vector<1xf32>
    %83 = vector.multi_reduction <add>, %82, %cst_35 [1, 2] : vector<1x8x1xf32> to vector<1xf32>
    %84 = vector.shape_cast %83 : vector<1xf32> to vector<1x1x1xf32>
    %85 = vector.extract %84[0, 0, 0] : f32 from vector<1x1x1xf32>
    %86 = arith.addf %74, %85 : f32
    %87 = arith.mulf %7, %7 : vector<8x32xf32>
    %cst_36 = arith.constant dense<0.000000e+00> : vector<8xf32>
    %88 = vector.multi_reduction <add>, %87, %cst_36 [1] : vector<8x32xf32> to vector<8xf32>
    %89 = vector.shape_cast %88 : vector<8xf32> to vector<8x1xf32>
    %cst_37 = arith.constant 1.000000e+00 : f32
    %90 = vector.broadcast %cst_37 : f32 to vector<8x1xf32>
    %91 = arith.subf %89, %90 : vector<8x1xf32>
    %cst_38 = arith.constant 0.000000e+00 : f32
    %92 = vector.broadcast %cst_38 : f32 to vector<8x1xf32>
    %93 = arith.maximumf %91, %92 : vector<8x1xf32>
    %94 = vector.shape_cast %93 : vector<8x1xf32> to vector<1x8x1xf32>
    %cst_39 = arith.constant dense<0.000000e+00> : vector<1xf32>
    %95 = vector.multi_reduction <add>, %94, %cst_39 [1, 2] : vector<1x8x1xf32> to vector<1xf32>
    %96 = vector.shape_cast %95 : vector<1xf32> to vector<1x1x1xf32>
    %97 = vector.extract %96[0, 0, 0] : f32 from vector<1x1x1xf32>
    %98 = arith.addf %86, %97 : f32
    %99 = arith.mulf %10, %10 : vector<8x32xf32>
    %cst_40 = arith.constant dense<0.000000e+00> : vector<8xf32>
    %100 = vector.multi_reduction <add>, %99, %cst_40 [1] : vector<8x32xf32> to vector<8xf32>
    %101 = vector.shape_cast %100 : vector<8xf32> to vector<8x1xf32>
    %cst_41 = arith.constant 1.000000e+00 : f32
    %102 = vector.broadcast %cst_41 : f32 to vector<8x1xf32>
    %103 = arith.subf %101, %102 : vector<8x1xf32>
    %cst_42 = arith.constant 0.000000e+00 : f32
    %104 = vector.broadcast %cst_42 : f32 to vector<8x1xf32>
    %105 = arith.maximumf %103, %104 : vector<8x1xf32>
    %106 = vector.shape_cast %105 : vector<8x1xf32> to vector<1x8x1xf32>
    %cst_43 = arith.constant dense<0.000000e+00> : vector<1xf32>
    %107 = vector.multi_reduction <add>, %106, %cst_43 [1, 2] : vector<1x8x1xf32> to vector<1xf32>
    %108 = vector.shape_cast %107 : vector<1xf32> to vector<1x1x1xf32>
    %109 = vector.extract %108[0, 0, 0] : f32 from vector<1x1x1xf32>
    %110 = arith.addf %98, %109 : f32
    %111 = arith.addf %63, %110 : f32
    %c1_44 = arith.constant 1 : index
    %112 = memref.load %arg11[%c1_44] : memref<3xf32, #tpu.memory_space<smem>>
    memref.store %111, %arg11[%c1_44] : memref<3xf32, #tpu.memory_space<smem>>
    %c2 = arith.constant 2 : index
    %113 = memref.load %arg11[%c2] : memref<3xf32, #tpu.memory_space<smem>>
    %114 = arith.mulf %5, %4 : vector<8x32xf32>
    %cst_45 = arith.constant dense<0.000000e+00> : vector<8xf32>
    %115 = vector.multi_reduction <add>, %114, %cst_45 [1] : vector<8x32xf32> to vector<8xf32>
    %116 = vector.shape_cast %115 : vector<8xf32> to vector<8x1xf32>
    %117 = arith.mulf %5, %5 : vector<8x32xf32>
    %cst_46 = arith.constant dense<0.000000e+00> : vector<8xf32>
    %118 = vector.multi_reduction <add>, %117, %cst_46 [1] : vector<8x32xf32> to vector<8xf32>
    %119 = vector.shape_cast %118 : vector<8xf32> to vector<8x1xf32>
    %120 = arith.mulf %116, %116 : vector<8x1xf32>
    %121 = tpu.reciprocal %119 : vector<8x1xf32> -> vector<8x1xf32>
    %122 = arith.mulf %120, %121 : vector<8x1xf32>
    %cst_47 = arith.constant 0.00999999977 : f32
    %123 = vector.broadcast %cst_47 : f32 to vector<8x1xf32>
    %124 = arith.subf %122, %123 : vector<8x1xf32>
    %cst_48 = arith.constant 0.000000e+00 : f32
    %125 = vector.broadcast %cst_48 : f32 to vector<8x1xf32>
    %126 = arith.maximumf %124, %125 : vector<8x1xf32>
    %127 = vector.shape_cast %126 : vector<8x1xf32> to vector<1x8x1xf32>
    %cst_49 = arith.constant dense<0.000000e+00> : vector<1xf32>
    %128 = vector.multi_reduction <add>, %127, %cst_49 [1, 2] : vector<1x8x1xf32> to vector<1xf32>
    %129 = vector.shape_cast %128 : vector<1xf32> to vector<1x1x1xf32>
    %130 = vector.extract %129[0, 0, 0] : f32 from vector<1x1x1xf32>
    %131 = arith.mulf %9, %8 : vector<8x32xf32>
    %cst_50 = arith.constant dense<0.000000e+00> : vector<8xf32>
    %132 = vector.multi_reduction <add>, %131, %cst_50 [1] : vector<8x32xf32> to vector<8xf32>
    %133 = vector.shape_cast %132 : vector<8xf32> to vector<8x1xf32>
    %134 = arith.mulf %9, %9 : vector<8x32xf32>
    %cst_51 = arith.constant dense<0.000000e+00> : vector<8xf32>
    %135 = vector.multi_reduction <add>, %134, %cst_51 [1] : vector<8x32xf32> to vector<8xf32>
    %136 = vector.shape_cast %135 : vector<8xf32> to vector<8x1xf32>
    %137 = arith.mulf %133, %133 : vector<8x1xf32>
    %138 = tpu.reciprocal %136 : vector<8x1xf32> -> vector<8x1xf32>
    %139 = arith.mulf %137, %138 : vector<8x1xf32>
    %cst_52 = arith.constant 0.00999999977 : f32
    %140 = vector.broadcast %cst_52 : f32 to vector<8x1xf32>
    %141 = arith.subf %139, %140 : vector<8x1xf32>
    %cst_53 = arith.constant 0.000000e+00 : f32
    %142 = vector.broadcast %cst_53 : f32 to vector<8x1xf32>
    %143 = arith.maximumf %141, %142 : vector<8x1xf32>
    %144 = vector.shape_cast %143 : vector<8x1xf32> to vector<1x8x1xf32>
    %cst_54 = arith.constant dense<0.000000e+00> : vector<1xf32>
    %145 = vector.multi_reduction <add>, %144, %cst_54 [1, 2] : vector<1x8x1xf32> to vector<1xf32>
    %146 = vector.shape_cast %145 : vector<1xf32> to vector<1x1x1xf32>
    %147 = vector.extract %146[0, 0, 0] : f32 from vector<1x1x1xf32>
    %148 = arith.addf %130, %147 : f32
    %149 = arith.addf %113, %148 : f32
    %c2_55 = arith.constant 2 : index
    %150 = memref.load %arg11[%c2_55] : memref<3xf32, #tpu.memory_space<smem>>
    memref.store %149, %arg11[%c2_55] : memref<3xf32, #tpu.memory_space<smem>>
    %c0_i32_56 = arith.constant 0 : i32
    %151 = arith.cmpi eq, %arg1, %c0_i32_56 : i32
    %152 = arith.extui %151 : i1 to i32
    %c0_i32_57 = arith.constant 0 : i32
    %153 = arith.cmpi ne, %152, %c0_i32_57 : i32
    scf.if %153 {
      %c0_58 = arith.constant 0 : index
      %154 = memref.load %arg11[%c0_58] : memref<3xf32, #tpu.memory_space<smem>>
      %cst_59 = arith.constant 8.000000e+00 : f32
      %155 = arith.divf %154, %cst_59 : f32
      %c1_60 = arith.constant 1 : index
      %156 = memref.load %arg11[%c1_60] : memref<3xf32, #tpu.memory_space<smem>>
      %cst_61 = arith.constant 3.200000e+01 : f32
      %157 = arith.divf %156, %cst_61 : f32
      %c2_62 = arith.constant 2 : index
      %158 = memref.load %arg11[%c2_62] : memref<3xf32, #tpu.memory_space<smem>>
      %cst_63 = arith.constant 1.600000e+01 : f32
      %159 = arith.divf %158, %cst_63 : f32
      %160 = arith.addf %157, %159 : f32
      %cst_64 = arith.constant 2.500000e-01 : f32
      %161 = arith.mulf %cst_64, %160 : f32
      %162 = arith.addf %155, %161 : f32
      %cst_65 = arith.constant 0.000000e+00 : f32
      %163 = vector.broadcast %cst_65 : f32 to vector<8x128xf32>
      %164 = vector.broadcast %162 : f32 to vector<8x128xf32>
      %165 = arith.addf %163, %164 : vector<8x128xf32>
      %c0_66 = arith.constant 0 : index
      %c0_67 = arith.constant 0 : index
      %166 = vector.load %arg10[%c0_66, %c0_67] : memref<8x128xf32, #tpu.memory_space<vmem>>, vector<8x128xf32>
      tpu.vector_store %arg10[%c0_66, %c0_67], %165 {strides = array<i32>} : memref<8x128xf32, #tpu.memory_space<vmem>>, vector<8x128xf32>,
    } else {
    }
    return
  }
  func.func @transform_0(%arg0: i32, %arg1: i32) -> (i32, i32) {
    %c1_i32 = arith.constant 1 : i32
    %0 = arith.muli %arg0, %c1_i32 : i32
    %1 = arith.addi %0, %arg1 : i32
    %c0_i32 = arith.constant 0 : i32
    %c0_i32_0 = arith.constant 0 : i32
    return %1, %c0_i32 : i32, i32
  }
  func.func @transform_1(%arg0: i32, %arg1: i32) -> (i32, i32) {
    %c1_i32 = arith.constant 1 : i32
    %0 = arith.muli %arg0, %c1_i32 : i32
    %1 = arith.addi %0, %arg1 : i32
    %c0_i32 = arith.constant 0 : i32
    %c0_i32_0 = arith.constant 0 : i32
    return %1, %c0_i32 : i32, i32
  }
  func.func @transform_2(%arg0: i32, %arg1: i32) -> (i32, i32) {
    %c1_i32 = arith.constant 1 : i32
    %0 = arith.muli %arg0, %c1_i32 : i32
    %1 = arith.addi %0, %arg1 : i32
    %c0_i32 = arith.constant 0 : i32
    %c0_i32_0 = arith.constant 0 : i32
    return %1, %c0_i32 : i32, i32
  }
  func.func @transform_3(%arg0: i32, %arg1: i32) -> (i32, i32) {
    %c1_i32 = arith.constant 1 : i32
    %0 = arith.muli %arg0, %c1_i32 : i32
    %1 = arith.addi %0, %arg1 : i32
    %c0_i32 = arith.constant 0 : i32
    %c0_i32_0 = arith.constant 0 : i32
    return %1, %c0_i32 : i32, i32
  }
  func.func @transform_4(%arg0: i32, %arg1: i32) -> (i32, i32) {
    %c1_i32 = arith.constant 1 : i32
    %0 = arith.muli %arg0, %c1_i32 : i32
    %1 = arith.addi %0, %arg1 : i32
    %c0_i32 = arith.constant 0 : i32
    %c0_i32_0 = arith.constant 0 : i32
    return %1, %c0_i32 : i32, i32
  }
  func.func @transform_5(%arg0: i32, %arg1: i32) -> (i32, i32) {
    %c1_i32 = arith.constant 1 : i32
    %0 = arith.muli %arg0, %c1_i32 : i32
    %1 = arith.addi %0, %arg1 : i32
    %c0_i32 = arith.constant 0 : i32
    %c0_i32_0 = arith.constant 0 : i32
    return %1, %c0_i32 : i32, i32
  }
  func.func @transform_6(%arg0: i32, %arg1: i32) -> (i32, i32) {
    %c1_i32 = arith.constant 1 : i32
    %0 = arith.muli %arg0, %c1_i32 : i32
    %1 = arith.addi %0, %arg1 : i32
    %c0_i32 = arith.constant 0 : i32
    %c0_i32_0 = arith.constant 0 : i32
    return %1, %c0_i32 : i32, i32
  }
  func.func @transform_7(%arg0: i32, %arg1: i32) -> (i32, i32) {
    %c1_i32 = arith.constant 1 : i32
    %0 = arith.muli %arg0, %c1_i32 : i32
    %1 = arith.addi %0, %arg1 : i32
    %c0_i32 = arith.constant 0 : i32
    %c0_i32_0 = arith.constant 0 : i32
    return %1, %c0_i32 : i32, i32
  }
  func.func @transform_8(%arg0: i32, %arg1: i32) -> (i32, i32) {
    %c0_i32 = arith.constant 0 : i32
    %c0_i32_0 = arith.constant 0 : i32
    return %arg0, %c0_i32 : i32, i32
  }
}

</mosaic_0001>

<llo_original>
// kernel: tpu_custom_call.1
$region0: #{tpu_custom_call.1}
  #allocation0 [shape = 'u32[]', space=smem, size = 0x4, offset = 0x4, fixed_abs, tag = 'smem constant byte address 0x4 - core index']
  #allocation1 [shape = 'u32[144,128]{1,0:T(1,128)}', space=vmem, size = 0x12000, scoped, tag = 'internal scratch']
  #allocation2 [shape = 'f32[3]{0:T(128)}', space=smem, size = 0x200, scoped, tag = 'scratch operand']
  %s0 = inlined_call_operand.hbm [shape: f32[8,32], index: 0, kind: input, shape index: {}]
  %s1 = inlined_call_operand.hbm [shape: f32[8,32], index: 1, kind: input, shape index: {}]
  %s2 = inlined_call_operand.hbm [shape: f32[8,32], index: 2, kind: input, shape index: {}]
  %s3 = inlined_call_operand.vmem [shape: f32[8,32], index: 3, kind: input, shape index: {}]
  %s4 = inlined_call_operand.hbm [shape: f32[8,32], index: 4, kind: input, shape index: {}]
  %s5 = inlined_call_operand.vmem [shape: f32[8,32], index: 5, kind: input, shape index: {}]
  %s6 = inlined_call_operand.hbm [shape: f32[8,32], index: 6, kind: input, shape index: {}]
  %s7 = inlined_call_operand.vmem [shape: f32[8,32], index: 7, kind: input, shape index: {}]
  %s8 = inlined_call_operand.hbm [shape: f32[8,128], index: 8, kind: output, shape index: {}]
  %s9 = sld [smem:[#allocation0]]
  $region70: #{tpu_custom_call.1} parent=0
    _
  %s11 = ssub.s32 1, %s9
  %s12 = scalar_select 0, %s11, %s9
  $region1: #{tpu_custom_call.1} parent=0
    #allocation3 [shape = 'u8[4096]{0}', space=vmem, size = 0x1000, scoped, tag = 'input window, operand 0, single buffered']
    #allocation4 [shape = 's32[1]{0}', space=sflag, size = 0x4, scoped, tag = 'scoped memory for tpu_custom_call.1']
    #allocation5 [shape = 's32[1]{0}', space=sflag, size = 0x4, scoped, tag = 'scoped memory for tpu_custom_call.1']
    #allocation6 [shape = 'u8[4096]{0}', space=vmem, size = 0x1000, scoped, tag = 'input window, operand 1, single buffered']
    #allocation7 [shape = 's32[1]{0}', space=sflag, size = 0x4, scoped, tag = 'scoped memory for tpu_custom_call.1']
    #allocation8 [shape = 'u8[4096]{0}', space=vmem, size = 0x1000, scoped, tag = 'input window, operand 2, single buffered']
    #allocation9 [shape = 'u8[4096]{0}', space=vmem, size = 0x1000, scoped, tag = 'input window, operand 4, single buffered']
    #allocation10 [shape = 's32[1]{0}', space=sflag, size = 0x4, scoped, tag = 'scoped memory for tpu_custom_call.1']
    #allocation11 [shape = 'u8[4096]{0}', space=vmem, size = 0x1000, scoped, tag = 'input window, operand 6, single buffered']
    #allocation12 [shape = 'u8[4096]{0}', space=vmem, size = 0x1000, scoped, tag = 'output window, operand 0, single buffered']
    %13 = vsyncpa [#allocation4], 0
    %14 = vsyncpa [#allocation7], 0
    %15 = vsyncpa [#allocation10], 0
    %16 = vsyncpa [#allocation5], 0
    // Predicated region
    $region2: #{tpu_custom_call.1} parent=1 // pred_check
      _
    $region3: #{tpu_custom_call.1} parent=1 // pred_check_branch
      %18 = sbr.rel (0) target = $region5
    $region4: #{tpu_custom_call.1} parent=1 // pred_region
      %s19 = sadd.s32 0, 0
      %s21 = ssub.s32 128, 128
      %22 = vsyncadd [#allocation4], %s21
      %s23 = smul.addr %s19, 128
      %s24 = scalar_lea.hbm %s0, %s23
      %s26 = sshll.u32 [#allocation3], 4
      %s27 = int_to_ptr.vmem [resolvable:$true] %s26
      %29 = dma.hbm_to_vmem [thread:$0]  %s24, 128, %s27, [#allocation4]
    $region5: #{tpu_custom_call.1} parent=1 // pred_fallthru
      _
    // Predicated region
    $region6: #{tpu_custom_call.1} parent=1 // pred_check
      _
    $region7: #{tpu_custom_call.1} parent=1 // pred_check_branch
      %31 = sbr.rel (0) target = $region9
    $region8: #{tpu_custom_call.1} parent=1 // pred_region
      %s32 = sadd.s32 0, 0
      %s34 = ssub.s32 128, 128
      %35 = vsyncadd [#allocation7], %s34
      %s36 = smul.addr %s32, 128
      %s37 = scalar_lea.hbm %s1, %s36
      %s39 = sshll.u32 [#allocation6], 4
      %s40 = int_to_ptr.vmem [resolvable:$true] %s39
      %42 = dma.hbm_to_vmem [thread:$0]  %s37, 128, %s40, [#allocation7]
    $region9: #{tpu_custom_call.1} parent=1 // pred_fallthru
      _
    // Predicated region
    $region10: #{tpu_custom_call.1} parent=1 // pred_check
      _
    $region11: #{tpu_custom_call.1} parent=1 // pred_check_branch
      %44 = sbr.rel (0) target = $region13
    $region12: #{tpu_custom_call.1} parent=1 // pred_region
      %s45 = sadd.s32 0, 0
      %s47 = ssub.s32 128, 128
      %48 = vsyncadd [#allocation7], %s47
      %s49 = smul.addr %s45, 128
      %s50 = scalar_lea.hbm %s2, %s49
      %s52 = sshll.u32 [#allocation8], 4
      %s53 = int_to_ptr.vmem [resolvable:$true] %s52
      %55 = dma.hbm_to_vmem [thread:$0]  %s50, 128, %s53, [#allocation7]
    $region13: #{tpu_custom_call.1} parent=1 // pred_fallthru
      _
    // Predicated region
    $region14: #{tpu_custom_call.1} parent=1 // pred_check
      _
    $region15: #{tpu_custom_call.1} parent=1 // pred_check_branch
      %57 = sbr.rel (0) target = $region17
    $region16: #{tpu_custom_call.1} parent=1 // pred_region
      %s58 = sadd.s32 0, 0
      %p59 = scmp.lt.s32.totalorder %s58, 0
      %s60 = scalar_select %p59, %s58, 0
      %s61 = smul.addr %s60, 8
      %s62 = scalar_lea.vmem %s3, %s61
      %s63 = sadd.s32 0, 0
    $region17: #{tpu_custom_call.1} parent=1 // pred_fallthru
      _
    // Predicated region
    $region18: #{tpu_custom_call.1} parent=1 // pred_check
      _
    $region19: #{tpu_custom_call.1} parent=1 // pred_check_branch
      %65 = sbr.rel (0) target = $region21
    $region20: #{tpu_custom_call.1} parent=1 // pred_region
      %s66 = sadd.s32 0, 0
      %s68 = ssub.s32 128, 128
      %69 = vsyncadd [#allocation10], %s68
      %s70 = smul.addr %s66, 128
      %s71 = scalar_lea.hbm %s4, %s70
      %s73 = sshll.u32 [#allocation9], 4
      %s74 = int_to_ptr.vmem [resolvable:$true] %s73
      %76 = dma.hbm_to_vmem [thread:$0]  %s71, 128, %s74, [#allocation10]
    $region21: #{tpu_custom_call.1} parent=1 // pred_fallthru
      _
    // Predicated region
    $region22: #{tpu_custom_call.1} parent=1 // pred_check
      _
    $region23: #{tpu_custom_call.1} parent=1 // pred_check_branch
      %78 = sbr.rel (0) target = $region25
    $region24: #{tpu_custom_call.1} parent=1 // pred_region
      %s79 = sadd.s32 0, 0
      %p80 = scmp.lt.s32.totalorder %s79, 0
      %s81 = scalar_select %p80, %s79, 0
      %s82 = smul.addr %s81, 8
      %s83 = scalar_lea.vmem %s5, %s82
      %s84 = sadd.s32 0, 0
    $region25: #{tpu_custom_call.1} parent=1 // pred_fallthru
      _
    // Predicated region
    $region26: #{tpu_custom_call.1} parent=1 // pred_check
      _
    $region27: #{tpu_custom_call.1} parent=1 // pred_check_branch
      %86 = sbr.rel (0) target = $region29
    $region28: #{tpu_custom_call.1} parent=1 // pred_region
      %s87 = sadd.s32 0, 0
      %s89 = ssub.s32 128, 128
      %90 = vsyncadd [#allocation10], %s89
      %s91 = smul.addr %s87, 128
      %s92 = scalar_lea.hbm %s6, %s91
      %s94 = sshll.u32 [#allocation11], 4
      %s95 = int_to_ptr.vmem [resolvable:$true] %s94
      %97 = dma.hbm_to_vmem [thread:$0]  %s92, 128, %s95, [#allocation10]
    $region29: #{tpu_custom_call.1} parent=1 // pred_fallthru
      _
    // Predicated region
    $region30: #{tpu_custom_call.1} parent=1 // pred_check
      _
    $region31: #{tpu_custom_call.1} parent=1 // pred_check_branch
      %99 = sbr.rel (0) target = $region33
    $region32: #{tpu_custom_call.1} parent=1 // pred_region
      %s100 = sadd.s32 0, 0
      %p101 = scmp.lt.s32.totalorder %s100, 0
      %s102 = scalar_select %p101, %s100, 0
      %s103 = smul.addr %s102, 8
      %s104 = scalar_lea.vmem %s7, %s103
      %s105 = sadd.s32 0, 0
    $region33: #{tpu_custom_call.1} parent=1 // pred_fallthru
      _
    // Predicated region
    $region34: #{tpu_custom_call.1} parent=1 // pred_check
      _
    $region35: #{tpu_custom_call.1} parent=1 // pred_check_branch
      %107 = sbr.rel (0) target = $region37
    $region36: #{tpu_custom_call.1} parent=1 // pred_region
      %108 = dma.done [#allocation4], 128
    $region37: #{tpu_custom_call.1} parent=1 // pred_fallthru
      _
    // Predicated region
    $region38: #{tpu_custom_call.1} parent=1 // pred_check
      _
    $region39: #{tpu_custom_call.1} parent=1 // pred_check_branch
      %110 = sbr.rel (0) target = $region41
    $region40: #{tpu_custom_call.1} parent=1 // pred_region
      %111 = dma.done [#allocation7], 128
    $region41: #{tpu_custom_call.1} parent=1 // pred_fallthru
      _
    // Predicated region
    $region42: #{tpu_custom_call.1} parent=1 // pred_check
      _
    $region43: #{tpu_custom_call.1} parent=1 // pred_check_branch
      %113 = sbr.rel (0) target = $region45
    $region44: #{tpu_custom_call.1} parent=1 // pred_region
      %114 = dma.done [#allocation7], 128
    $region45: #{tpu_custom_call.1} parent=1 // pred_fallthru
      _
    // Predicated region
    $region46: #{tpu_custom_call.1} parent=1 // pred_check
      _
    $region47: #{tpu_custom_call.1} parent=1 // pred_check_branch
      %116 = sbr.rel (0) target = $region49
    $region48: #{tpu_custom_call.1} parent=1 // pred_region
      %117 = dma.done [#allocation10], 128
    $region49: #{tpu_custom_call.1} parent=1 // pred_fallthru
      _
    // Predicated region
    $region50: #{tpu_custom_call.1} parent=1 // pred_check
      _
    $region51: #{tpu_custom_call.1} parent=1 // pred_check_branch
      %119 = sbr.rel (0) target = $region53
    $region52: #{tpu_custom_call.1} parent=1 // pred_region
      %120 = dma.done [#allocation10], 128
    $region53: #{tpu_custom_call.1} parent=1 // pred_fallthru
      _
    %s121 = sadd.s32 0, 0
    %p122 = scmp.lt.s32.totalorder %s121, 0
    %s123 = scalar_select %p122, %s121, 0
    %s124 = smul.addr %s123, 8
    %s125 = scalar_lea.vmem %s3, %s124
    %s126 = sadd.s32 0, 0
    %p127 = scmp.lt.s32.totalorder %s126, 0
    %s128 = scalar_select %p127, %s126, 0
    %s129 = smul.addr %s128, 8
    %s130 = scalar_lea.vmem %s5, %s129
    %s131 = sadd.s32 0, 0
    %p132 = scmp.lt.s32.totalorder %s131, 0
    %s133 = scalar_select %p132, %s131, 0
    %s134 = smul.addr %s133, 8
    %s135 = scalar_lea.vmem %s7, %s134
    %s136 = sadd.s32 0, 0
    %s137 = sadd.s32 0, 0
    %s138 = sadd.s32 0, 0
    %s139 = sadd.s32 0, 0
    %p140 = scmp.lt.s32.totalorder %s139, 0
    %s141 = scalar_select %p140, %s139, 0
    %s142 = smul.addr %s141, 8
    %s143 = scalar_lea.vmem %s3, %s142
    %s144 = sadd.s32 0, 0
    %s145 = sadd.s32 0, 0
    %s146 = sadd.s32 0, 0
    %p147 = scmp.lt.s32.totalorder %s146, 0
    %s148 = scalar_select %p147, %s146, 0
    %s149 = smul.addr %s148, 8
    %s150 = scalar_lea.vmem %s5, %s149
    %s151 = sadd.s32 0, 0
    %s152 = sadd.s32 0, 0
    %s153 = sadd.s32 0, 0
    %p154 = scmp.lt.s32.totalorder %s153, 0
    %s155 = scalar_select %p154, %s153, 0
    %s156 = smul.addr %s155, 8
    %s157 = scalar_lea.vmem %s7, %s156
    %s158 = sadd.s32 0, 0
    %p159 = scmp.eq.s32.totalorder 0, 0
    // Predicated region
    $region54: #{tpu_custom_call.1} parent=1 // pred_check
      %p160 = pneg %p159
    $region55: #{tpu_custom_call.1} parent=1 // pred_check_branch
      %162 = sbr.rel (%p160) target = $region57
    $region56: #{tpu_custom_call.1} parent=1 // pred_region
      %s163 = scalar_lea.smem [#allocation2], 0
      %164 = sst [smem:[%s163]] 0.0
      %s165 = scalar_lea.smem [#allocation2], 1
      %166 = sst [smem:[%s165]] 0.0
      %s167 = scalar_lea.smem [#allocation2], 2
      %168 = sst [smem:[%s167]] 0.0
    $region57: #{tpu_custom_call.1} parent=1 // pred_fallthru
      _
    %v169 = vld [vmem:[#allocation3] sm:$0xff]
    %v170 = vld [vmem:[#allocation6] sm:$0xff]
    %v171 = vld [vmem:[#allocation8] sm:$0xff]
    %v172 = vld [vmem:[%s143] sm:$0xff]
    %v173 = vld [vmem:[#allocation9] sm:$0xff]
    %v174 = vld [vmem:[%s150] sm:$0xff]
    %v175 = vld [vmem:[#allocation11] sm:$0xff]
    %v176 = vld [vmem:[%s157] sm:$0xff]
    %v177 = vmul.f32 %v170, %v170
    %vm178 = vcmask 261120
    %v179 = vsel %vm178, %v177, 0.0
    %180 = vadd.xlane.f32.xlu0 %v179
    %v181 = vpop.xlane.xlu0 %180
    %v182 = vmax.f32 %v181, 1e-24
    %v183 = vrsqrt.pop %v182
    %v184 = vmul.f32 %v170, %v183
    %v185 = vsub.f32 %v169, %v172
    %v186 = vmul.f32 %v185, %v184
    %v187 = vsel %vm178, %v186, 0.0
    %188 = vadd.xlane.f32.xlu0 %v187
    %v189 = vpop.xlane.xlu0 %188
    %v190 = vmul.f32 %v189, %v184
    %v191 = vsub.f32 %v185, %v190
    %v192 = vadd.f32 %v191, %v171
    %v193 = vmul.f32 %v192, %v192
    %v194 = vsel %vm178, %v193, 0.0
    %195 = vadd.xlane.f32.xlu0 %v194
    %v196 = vpop.xlane.xlu0 %195
    %v197 = vrsqrt.pop %v196
    %v198 = vmul.f32 %v196, %v197
    %vm199 = vcmp.eq.f32.partialorder %v196, inf
    %v200 = vsel %vm199, %v196, %v198
    %vm201 = vcmp.eq.f32.partialorder %v196, 0.0
    %v202 = vand.u32 %v196, 2147483648
    %v203 = vsel %vm201, %v202, %v200
    %v204 = vmul.f32 %v174, %v174
    %v205 = vsel %vm178, %v204, 0.0
    %206 = vadd.xlane.f32.xlu0 %v205
    %v207 = vpop.xlane.xlu0 %206
    %v208 = vmax.f32 %v207, 1e-24
    %v209 = vrsqrt.pop %v208
    %v210 = vmul.f32 %v174, %v209
    %v211 = vsub.f32 %v173, %v176
    %v212 = vmul.f32 %v211, %v210
    %v213 = vsel %vm178, %v212, 0.0
    %214 = vadd.xlane.f32.xlu0 %v213
    %v215 = vpop.xlane.xlu0 %214
    %v216 = vmul.f32 %v215, %v210
    %v217 = vsub.f32 %v211, %v216
    %v218 = vadd.f32 %v217, %v175
    %v219 = vmul.f32 %v218, %v218
    %v220 = vsel %vm178, %v219, 0.0
    %221 = vadd.xlane.f32.xlu0 %v220
    %v222 = vpop.xlane.xlu0 %221
    %v223 = vrsqrt.pop %v222
    %v224 = vmul.f32 %v222, %v223
    %vm225 = vcmp.eq.f32.partialorder %v222, inf
    %v226 = vsel %vm225, %v222, %v224
    %vm227 = vcmp.eq.f32.partialorder %v222, 0.0
    %v228 = vand.u32 %v222, 2147483648
    %v229 = vsel %vm227, %v228, %v226
    %s230 = sld [smem:[#allocation2]]
    %v231 = vsub.f32 %v203, %v229
    %v232 = vadd.f32 %v231, 1.0
    %v233 = vmax.f32 %v232, 0.0
    %vm234 = vcmask 7168
    %v235 = vsel %vm234, %v233, 0.0
    %236 = vadd.xlane.f32.xlu0 %v235
    %v237 = vpop.xlane.xlu0 %236
    %v238 = vrot.slane %v237, 4
    %v239 = vadd.f32 %v237, %v238
    %v240 = vrot.slane %v239, 2
    %v241 = vadd.f32 %v239, %v240
    %v242 = vrot.slane %v241, 1
    %v243 = vadd.f32 %v241, %v242
    %s244 = vtos %v243
    %s245 = sadd.f32 %s230, %s244
    %s246 = scalar_lea.smem [#allocation2], 0
    %247 = sst [smem:[%s246]] %s245
    %s248 = sld [smem:[#allocation2 + $0x1]]
    %v249 = vmul.f32 %v169, %v169
    %v250 = vsel %vm178, %v249, 0.0
    %251 = vadd.xlane.f32.xlu0 %v250
    %v252 = vpop.xlane.xlu0 %251
    %v253 = vsub.f32 %v252, 1.0
    %v254 = vmax.f32 %v253, 0.0
    %v255 = vsel %vm234, %v254, 0.0
    %256 = vadd.xlane.f32.xlu0 %v255
    %v257 = vpop.xlane.xlu0 %256
    %v258 = vrot.slane %v257, 4
    %v259 = vadd.f32 %v257, %v258
    %v260 = vrot.slane %v259, 2
    %v261 = vadd.f32 %v259, %v260
    %v262 = vrot.slane %v261, 1
    %v263 = vadd.f32 %v261, %v262
    %s264 = vtos %v263
    %v265 = vmul.f32 %v172, %v172
    %v266 = vsel %vm178, %v265, 0.0
    %267 = vadd.xlane.f32.xlu0 %v266
    %v268 = vpop.xlane.xlu0 %267
    %v269 = vsub.f32 %v268, 1.0
    %v270 = vmax.f32 %v269, 0.0
    %v271 = vsel %vm234, %v270, 0.0
    %272 = vadd.xlane.f32.xlu0 %v271
    %v273 = vpop.xlane.xlu0 %272
    %v274 = vrot.slane %v273, 4
    %v275 = vadd.f32 %v273, %v274
    %v276 = vrot.slane %v275, 2
    %v277 = vadd.f32 %v275, %v276
    %v278 = vrot.slane %v277, 1
    %v279 = vadd.f32 %v277, %v278
    %s280 = vtos %v279
    %s281 = sadd.f32 %s264, %s280
    %v282 = vmul.f32 %v173, %v173
    %v283 = vsel %vm178, %v282, 0.0
    %284 = vadd.xlane.f32.xlu0 %v283
    %v285 = vpop.xlane.xlu0 %284
    %v286 = vsub.f32 %v285, 1.0
    %v287 = vmax.f32 %v286, 0.0
    %v288 = vsel %vm234, %v287, 0.0
    %289 = vadd.xlane.f32.xlu0 %v288
    %v290 = vpop.xlane.xlu0 %289
    %v291 = vrot.slane %v290, 4
    %v292 = vadd.f32 %v290, %v291
    %v293 = vrot.slane %v292, 2
    %v294 = vadd.f32 %v292, %v293
    %v295 = vrot.slane %v294, 1
    %v296 = vadd.f32 %v294, %v295
    %s297 = vtos %v296
    %s298 = sadd.f32 %s281, %s297
    %v299 = vmul.f32 %v176, %v176
    %v300 = vsel %vm178, %v299, 0.0
    %301 = vadd.xlane.f32.xlu0 %v300
    %v302 = vpop.xlane.xlu0 %301
    %v303 = vsub.f32 %v302, 1.0
    %v304 = vmax.f32 %v303, 0.0
    %v305 = vsel %vm234, %v304, 0.0
    %306 = vadd.xlane.f32.xlu0 %v305
    %v307 = vpop.xlane.xlu0 %306
    %v308 = vrot.slane %v307, 4
    %v309 = vadd.f32 %v307, %v308
    %v310 = vrot.slane %v309, 2
    %v311 = vadd.f32 %v309, %v310
    %v312 = vrot.slane %v311, 1
    %v313 = vadd.f32 %v311, %v312
    %s314 = vtos %v313
    %s315 = sadd.f32 %s298, %s314
    %s316 = sadd.f32 %s248, %s315
    %s317 = scalar_lea.smem [#allocation2], 1
    %318 = sst [smem:[%s317]] %s316
    %s319 = sld [smem:[#allocation2 + $0x2]]
    %v320 = vmul.f32 %v171, %v170
    %v321 = vsel %vm178, %v320, 0.0
    %322 = vadd.xlane.f32.xlu0 %v321
    %v323 = vpop.xlane.xlu0 %322
    %v324 = vmul.f32 %v171, %v171
    %v325 = vsel %vm178, %v324, 0.0
    %326 = vadd.xlane.f32.xlu0 %v325
    %v327 = vpop.xlane.xlu0 %326
    %v328 = vmul.f32 %v323, %v323
    %v329 = vrcp.pop %v327
    %v330 = vmul.f32 %v328, %v329
    %v331 = vsub.f32 %v330, 0.01
    %v332 = vmax.f32 %v331, 0.0
    %v333 = vsel %vm234, %v332, 0.0
    %334 = vadd.xlane.f32.xlu0 %v333
    %v335 = vpop.xlane.xlu0 %334
    %v336 = vrot.slane %v335, 4
    %v337 = vadd.f32 %v335, %v336
    %v338 = vrot.slane %v337, 2
    %v339 = vadd.f32 %v337, %v338
    %v340 = vrot.slane %v339, 1
    %v341 = vadd.f32 %v339, %v340
    %s342 = vtos %v341
    %v343 = vmul.f32 %v175, %v174
    %v344 = vsel %vm178, %v343, 0.0
    %345 = vadd.xlane.f32.xlu0 %v344
    %v346 = vpop.xlane.xlu0 %345
    %v347 = vmul.f32 %v175, %v175
    %v348 = vsel %vm178, %v347, 0.0
    %349 = vadd.xlane.f32.xlu0 %v348
    %v350 = vpop.xlane.xlu0 %349
    %v351 = vmul.f32 %v346, %v346
    %v352 = vrcp.pop %v350
    %v353 = vmul.f32 %v351, %v352
    %v354 = vsub.f32 %v353, 0.01
    %v355 = vmax.f32 %v354, 0.0
    %v356 = vsel %vm234, %v355, 0.0
    %357 = vadd.xlane.f32.xlu0 %v356
    %v358 = vpop.xlane.xlu0 %357
    %v359 = vrot.slane %v358, 4
    %v360 = vadd.f32 %v358, %v359
    %v361 = vrot.slane %v360, 2
    %v362 = vadd.f32 %v360, %v361
    %v363 = vrot.slane %v362, 1
    %v364 = vadd.f32 %v362, %v363
    %s365 = vtos %v364
    %s366 = sadd.f32 %s342, %s365
    %s367 = sadd.f32 %s319, %s366
    %s368 = scalar_lea.smem [#allocation2], 2
    %369 = sst [smem:[%s368]] %s367
    // Predicated region
    $region58: #{tpu_custom_call.1} parent=1 // pred_check
      %p370 = pneg %p159
    $region59: #{tpu_custom_call.1} parent=1 // pred_check_branch
      %372 = sbr.rel (%p370) target = $region61
    $region60: #{tpu_custom_call.1} parent=1 // pred_region
      %s373 = sld [smem:[#allocation2]]
      %v374 = vrcp.pop 8.0
      %s375 = vtos %v374
      %s376 = smul.f32 %s373, %s375
      %s377 = sld [smem:[#allocation2 + $0x1]]
      %v378 = vrcp.pop 32.0
      %s379 = vtos %v378
      %s380 = smul.f32 %s377, %s379
      %s381 = sld [smem:[#allocation2 + $0x2]]
      %v382 = vrcp.pop 16.0
      %s383 = vtos %v382
      %s384 = smul.f32 %s381, %s383
      %s385 = sadd.f32 %s380, %s384
      %s386 = smul.f32 %s385, 0.25
      %s387 = sadd.f32 %s376, %s386
      %v388 = vstv %s387
      %v389 = vadd.f32 %v388, 0.0
      %390 = vst [vmem:[#allocation12] sm:$0xff] %v389
    $region61: #{tpu_custom_call.1} parent=1 // pred_fallthru
      _
    // Predicated region
    $region62: #{tpu_custom_call.1} parent=1 // pred_check
      _
    $region63: #{tpu_custom_call.1} parent=1 // pred_check_branch
      %392 = sbr.rel (0) target = $region65
    $region64: #{tpu_custom_call.1} parent=1 // pred_region
      %s394 = ssub.s32 128, 128
      %395 = vsyncadd [#allocation5], %s394
      %s397 = sshll.u32 [#allocation12], 4
      %s398 = int_to_ptr.vmem [resolvable:$true] %s397
      %400 = dma.vmem_to_hbm [thread:$0]  %s398, 128, %s8, [#allocation5]
    $region65: #{tpu_custom_call.1} parent=1 // pred_fallthru
      _
    // Predicated region
    $region66: #{tpu_custom_call.1} parent=1 // pred_check
      _
    $region67: #{tpu_custom_call.1} parent=1 // pred_check_branch
      %402 = sbr.rel (0) target = $region69
    $region68: #{tpu_custom_call.1} parent=1 // pred_region
      %403 = dma.done [#allocation5], 128
    $region69: #{tpu_custom_call.1} parent=1 // pred_fallthru
      _
    %404 = vsyncpa [#allocation4], 1
    %405 = vsyncpa [#allocation7], 1
    %406 = vsyncpa [#allocation10], 1
    %407 = vsyncpa [#allocation5], 1

</llo_original>
